<compile_context>
chip_gen: v7x
topology: tpu7x:2x2x1
jax: 0.10.0
libtpu: 0.0.40
codegen_flags: <defaults>
</compile_context>

<pallas_src>
import functools

import jax
import jax.numpy as jnp
from jax.experimental import pallas as pl
from jax.experimental.pallas import tpu as pltpu


def att_module_kernel(x_ref, w1_ref, b1_ref, w2_ref, b2_ref, out_ref,
                      max_acc, sum_acc, *, inv_e):
    ei = pl.program_id(1)

    # ---- init running accumulators at the first E step ---------------------
    @pl.when(ei == 0)
    def _():
        max_acc[...] = jnp.full(max_acc.shape, -jnp.inf, dtype=max_acc.dtype)
        sum_acc[...] = jnp.zeros(sum_acc.shape, dtype=sum_acc.dtype)

    # ---- streaming pooling over the emb (sublane) axis ----------------------
    x = x_ref[...].astype(jnp.float32)                    # (b_tile, e_tile, T)
    max_acc[...] = jnp.maximum(max_acc[...], jnp.max(x, axis=1))
    sum_acc[...] = sum_acc[...] + jnp.sum(x, axis=1)

    # ---- fused MLP + sigmoid epilogue at the last E step --------------------
    @pl.when(ei == pl.num_programs(1) - 1)
    def _():
        b_tile = max_acc.shape[0]
        x_max = max_acc[...]                              # (b_tile, T)
        x_avg = sum_acc[...] * inv_e                      # mean = sum * (1/E)

        # Stack both branches -> one pair of MXU matmuls with 2*b_tile rows.
        pooled = jnp.concatenate([x_max, x_avg], axis=0)  # (2*b_tile, T)
        h = jnp.dot(pooled, w1_ref[...],
                    preferred_element_type=jnp.float32) + b1_ref[...]
        h = jnp.maximum(h, 0.0)                           # ReLU
        y = jnp.dot(h, w2_ref[...],
                    preferred_element_type=jnp.float32) + b2_ref[...]

        scale = jax.nn.sigmoid(y[:b_tile] + y[b_tile:])   # (b_tile, T)
        out_ref[...] = scale.astype(out_ref.dtype)        # lane-dense store


def _largest_divisor(n, cap):
    """Largest divisor of n that is <= cap (>= 1)."""
    for d in range(max(1, min(n, cap)), 0, -1):
        if n % d == 0:
            return d
    return 1


def att_module_forward(x, w1, b1, w2, b2, *, b_tile=None, e_tile=None):
    """x: (B, temp_dim, emb) -> scale: (B, temp_dim, 1)."""
    B, T, E = x.shape
    H = w1.shape[1]

    # Layout plumbing in the wrapper: put T on the 128-lane axis, the reduced
    # emb axis on sublanes.  (At production T this should be a multiple of
    # 128; here T is the full axis so the compiler pads internally.)
    x_t = jnp.transpose(x, (0, 2, 1))                     # (B, E, T)

    if b_tile is None:
        if B % 8 == 0:
            b_tile = 8 * _largest_divisor(B // 8, 8)      # sublane-aligned, <=64
        else:
            b_tile = B                                    # full-axis exemption
    if e_tile is None:
        # Cap each streamed x tile at ~4 MiB f32 (double-buffered pipeline
        # fits even in v7x's 64 MiB VMEM); partial chunks must be multiples of 8.
        budget_rows = max(8, ((4 << 20) // (4 * b_tile * T)) // 8 * 8)
        if E % 8 == 0 and E > budget_rows:
            e_tile = 8 * _largest_divisor(E // 8, budget_rows // 8)
        else:
            e_tile = E

    grid = (B // b_tile, E // e_tile)

    kernel = functools.partial(att_module_kernel, inv_e=1.0 / E)

    cost = pl.CostEstimate(
        flops=int(8 * B * T * H + 4 * B * T * E),
        transcendentals=int(B * T),
        bytes_accessed=int(4 * (B * T * E + 2 * T * H + H + T + B * T)),
    )

    scale_2d = pl.pallas_call(
        kernel,
        out_shape=jax.ShapeDtypeStruct((B, T), jnp.float32),
        grid_spec=pltpu.PrefetchScalarGridSpec(
            num_scalar_prefetch=0,
            grid=grid,
            in_specs=[
                # Streamed activation tile.
                pl.BlockSpec((b_tile, e_tile, T), lambda bi, ei: (bi, ei, 0)),
                # Tiny MLP weights: constant block -> stay VMEM-resident.
                pl.BlockSpec((T, H), lambda bi, ei: (0, 0)),
                pl.BlockSpec((1, H), lambda bi, ei: (0, 0)),
                pl.BlockSpec((H, T), lambda bi, ei: (0, 0)),
                pl.BlockSpec((1, T), lambda bi, ei: (0, 0)),
            ],
            # Output block is constant along the E (reduction) axis; it is
            # written once, at the last E step.
            out_specs=pl.BlockSpec((b_tile, T), lambda bi, ei: (bi, 0)),
            scratch_shapes=[
                pltpu.VMEM((b_tile, T), jnp.float32),     # running max
                pltpu.VMEM((b_tile, T), jnp.float32),     # running sum
            ],
        ),
        compiler_params=pltpu.CompilerParams(
            # B is independent (megacore-shardable on v7x); the E reduction is
            # "arbitrary" and placed last so accumulators/output stay resident.
            dimension_semantics=("parallel", "arbitrary"),
            # Safe on every generation (v7x physical VMEM = 64 MiB); tile
            # budgeting above keeps double-buffered inputs well under this.
            vmem_limit_bytes=32 * 1024 * 1024,
        ),
        cost_estimate=cost,
    )(x_t, w1, b1, w2, b2)

    # unsqueeze(2)
    return scale_2d[:, :, None]


def make_params(key, temp_dim, ratio):
    """Deterministic init matching nn.Linear shapes (stored transposed)."""
    out_temp_dim = int(temp_dim / ratio)
    k1, k2, k3, k4 = jax.random.split(key, 4)
    lim1 = 1.0 / jnp.sqrt(temp_dim)
    lim2 = 1.0 / jnp.sqrt(out_temp_dim)
    w1 = jax.random.uniform(k1, (temp_dim, out_temp_dim), jnp.float32, -lim1, lim1)
    b1 = jax.random.uniform(k2, (1, out_temp_dim), jnp.float32, -lim1, lim1)
    w2 = jax.random.uniform(k3, (out_temp_dim, temp_dim), jnp.float32, -lim2, lim2)
    b2 = jax.random.uniform(k4, (1, temp_dim), jnp.float32, -lim2, lim2)
    return w1, b1, w2, b2


def reference_forward(x, w1, b1, w2, b2):
    """Pure-JAX reference (mirrors the PyTorch forward)."""
    x_max = jnp.max(x, axis=2)
    x_avg = jnp.mean(x, axis=2)

    def mlp(v):
        h = jnp.maximum(v @ w1 + b1, 0.0)
        return h @ w2 + b2

    return jax.nn.sigmoid(mlp(x_max) + mlp(x_avg))[:, :, None]


if __name__ == "__main__":
    # Module hyperparams: ratio=4, temp_dim=32, emb=8  ->  x: (B, temp_dim, emb)
    B, temp_dim, emb, ratio = 2, 32, 8, 4

    key = jax.random.PRNGKey(0)
    kx, kp = jax.random.split(key)
    x = jax.random.normal(kx, (B, temp_dim, emb), jnp.float32)
    w1, b1, w2, b2 = make_params(kp, temp_dim, ratio)

    out = att_module_forward(x, w1, b1, w2, b2)
    out = jax.block_until_ready(out)

    ref = reference_forward(x, w1, b1, w2, b2)
    assert out.shape == (B, temp_dim, 1), out.shape
    assert jnp.allclose(out, ref, atol=1e-5, rtol=1e-5), "mismatch vs reference"

    print("KERNEL_OK")
</pallas_src>

<mosaic_0001>
module attributes {stable_mosaic.version = 11 : i64} {
  func.func @att_module_kernel(%arg0: i32, %arg1: i32, %arg2: memref<2x8x32xf32, #tpu.memory_space<vmem>>, %arg3: memref<32x8xf32, #tpu.memory_space<vmem>>, %arg4: memref<1x8xf32, #tpu.memory_space<vmem>>, %arg5: memref<8x32xf32, #tpu.memory_space<vmem>>, %arg6: memref<1x32xf32, #tpu.memory_space<vmem>>, %arg7: memref<2x32xf32, #tpu.memory_space<vmem>>, %arg8: memref<2x32xf32, #tpu.memory_space<vmem>>, %arg9: memref<2x32xf32, #tpu.memory_space<vmem>>) attributes {dimension_semantics = [#tpu.dimension_semantics<parallel>, #tpu.dimension_semantics<arbitrary>], iteration_bounds = array<i64: 1, 1>, scalar_prefetch = 0 : i64, scratch_operands = 2 : i64, tpu.core_type = #tpu.core_type<tc>, window_params = [{transform_indices = @transform_0, window_bounds = array<i64: 2, 8, 32>}, {pipeline_mode = #tpu.pipeline_mode<synchronous>, transform_indices = @transform_1, window_bounds = array<i64: 32, 8>}, {pipeline_mode = #tpu.pipeline_mode<synchronous>, transform_indices = @transform_2, window_bounds = array<i64: 1, 8>}, {pipeline_mode = #tpu.pipeline_mode<synchronous>, transform_indices = @transform_3, window_bounds = array<i64: 8, 32>}, {pipeline_mode = #tpu.pipeline_mode<synchronous>, transform_indices = @transform_4, window_bounds = array<i64: 1, 32>}, {transform_indices = @transform_5, window_bounds = array<i64: 2, 32>}]} {
    %c0_i32 = arith.constant 0 : i32
    %0 = arith.cmpi eq, %arg1, %c0_i32 : i32
    %1 = arith.extui %0 : i1 to i32
    %c0_i32_0 = arith.constant 0 : i32
    %2 = arith.cmpi ne, %1, %c0_i32_0 : i32
    scf.if %2 {
      %cst_14 = arith.constant 0xFF800000 : f32
      %15 = vector.broadcast %cst_14 : f32 to vector<2x32xf32>
      %c0_15 = arith.constant 0 : index
      %c0_16 = arith.constant 0 : index
      %16 = vector.load %arg8[%c0_15, %c0_16] : memref<2x32xf32, #tpu.memory_space<vmem>>, vector<2x32xf32>
      tpu.vector_store %arg8[%c0_15, %c0_16], %15 {strides = array<i32>} : memref<2x32xf32, #tpu.memory_space<vmem>>, vector<2x32xf32>,
      %cst_17 = arith.constant 0.000000e+00 : f32
      %17 = vector.broadcast %cst_17 : f32 to vector<2x32xf32>
      %c0_18 = arith.constant 0 : index
      %c0_19 = arith.constant 0 : index
      %18 = vector.load %arg9[%c0_18, %c0_19] : memref<2x32xf32, #tpu.memory_space<vmem>>, vector<2x32xf32>
      tpu.vector_store %arg9[%c0_18, %c0_19], %17 {strides = array<i32>} : memref<2x32xf32, #tpu.memory_space<vmem>>, vector<2x32xf32>,
    } else {
    }
    %c0 = arith.constant 0 : index
    %c0_1 = arith.constant 0 : index
    %c0_2 = arith.constant 0 : index
    %3 = vector.load %arg2[%c0, %c0_1, %c0_2] : memref<2x8x32xf32, #tpu.memory_space<vmem>>, vector<2x8x32xf32>
    %c0_3 = arith.constant 0 : index
    %c0_4 = arith.constant 0 : index
    %4 = vector.load %arg8[%c0_3, %c0_4] : memref<2x32xf32, #tpu.memory_space<vmem>>, vector<2x32xf32>
    %cst = arith.constant dense<0xFF800000> : vector<2x32xf32>
    %5 = vector.multi_reduction <maximumf>, %3, %cst [1] : vector<2x8x32xf32> to vector<2x32xf32>
    %6 = arith.maximumf %4, %5 : vector<2x32xf32>
    %c0_5 = arith.constant 0 : index
    %c0_6 = arith.constant 0 : index
    %7 = vector.load %arg8[%c0_5, %c0_6] : memref<2x32xf32, #tpu.memory_space<vmem>>, vector<2x32xf32>
    tpu.vector_store %arg8[%c0_5, %c0_6], %6 {strides = array<i32>} : memref<2x32xf32, #tpu.memory_space<vmem>>, vector<2x32xf32>,
    %c0_7 = arith.constant 0 : index
    %c0_8 = arith.constant 0 : index
    %8 = vector.load %arg9[%c0_7, %c0_8] : memref<2x32xf32, #tpu.memory_space<vmem>>, vector<2x32xf32>
    %cst_9 = arith.constant dense<0.000000e+00> : vector<2x32xf32>
    %9 = vector.multi_reduction <add>, %3, %cst_9 [1] : vector<2x8x32xf32> to vector<2x32xf32>
    %10 = arith.addf %8, %9 : vector<2x32xf32>
    %c0_10 = arith.constant 0 : index
    %c0_11 = arith.constant 0 : index
    %11 = vector.load %arg9[%c0_10, %c0_11] : memref<2x32xf32, #tpu.memory_space<vmem>>, vector<2x32xf32>
    tpu.vector_store %arg9[%c0_10, %c0_11], %10 {strides = array<i32>} : memref<2x32xf32, #tpu.memory_space<vmem>>, vector<2x32xf32>,
    %c0_i32_12 = arith.constant 0 : i32
    %12 = arith.cmpi eq, %arg1, %c0_i32_12 : i32
    %13 = arith.extui %12 : i1 to i32
    %c0_i32_13 = arith.constant 0 : i32
    %14 = arith.cmpi ne, %13, %c0_i32_13 : i32
    scf.if %14 {
      %c0_14 = arith.constant 0 : index
      %c0_15 = arith.constant 0 : index
      %15 = vector.load %arg8[%c0_14, %c0_15] : memref<2x32xf32, #tpu.memory_space<vmem>>, vector<2x32xf32>
      %c0_16 = arith.constant 0 : index
      %c0_17 = arith.constant 0 : index
      %16 = vector.load %arg9[%c0_16, %c0_17] : memref<2x32xf32, #tpu.memory_space<vmem>>, vector<2x32xf32>
      %cst_18 = arith.constant 1.250000e-01 : f32
      %17 = vector.broadcast %cst_18 : f32 to vector<2x32xf32>
      %18 = arith.mulf %16, %17 : vector<2x32xf32>
      %19 = tpu.concatenate %15, %18 in 0 : vector<2x32xf32>, vector<2x32xf32> -> vector<4x32xf32>
      %c0_19 = arith.constant 0 : index
      %c0_20 = arith.constant 0 : index
      %20 = vector.load %arg3[%c0_19, %c0_20] : memref<32x8xf32, #tpu.memory_space<vmem>>, vector<32x8xf32>
      %cst_21 = arith.constant dense<0.000000e+00> : vector<4x8xf32>
      %21 = tpu.matmul %19, %20, %cst_21 {dimension_numbers = #tpu.dot_dimension_numbers<[1], [0], [0], [1], [0, 0, 1, 1], [], []>} : vector<4x32xf32>, vector<32x8xf32>, vector<4x8xf32> -> vector<4x8xf32>
      %c0_22 = arith.constant 0 : index
      %c0_23 = arith.constant 0 : index
      %22 = vector.load %arg4[%c0_22, %c0_23] : memref<1x8xf32, #tpu.memory_space<vmem>>, vector<1x8xf32>
      %23 = vector.broadcast %22 : vector<1x8xf32> to vector<4x8xf32>
      %24 = arith.addf %21, %23 : vector<4x8xf32>
      %cst_24 = arith.constant 0.000000e+00 : f32
      %25 = vector.broadcast %cst_24 : f32 to vector<4x8xf32>
      %26 = arith.maximumf %24, %25 : vector<4x8xf32>
      %c0_25 = arith.constant 0 : index
      %c0_26 = arith.constant 0 : index
      %27 = vector.load %arg5[%c0_25, %c0_26] : memref<8x32xf32, #tpu.memory_space<vmem>>, vector<8x32xf32>
      %cst_27 = arith.constant dense<0.000000e+00> : vector<4x32xf32>
      %28 = tpu.matmul %26, %27, %cst_27 {dimension_numbers = #tpu.dot_dimension_numbers<[1], [0], [0], [1], [0, 0, 1, 1], [], []>} : vector<4x8xf32>, vector<8x32xf32>, vector<4x32xf32> -> vector<4x32xf32>
      %c0_28 = arith.constant 0 : index
      %c0_29 = arith.constant 0 : index
      %29 = vector.load %arg6[%c0_28, %c0_29] : memref<1x32xf32, #tpu.memory_space<vmem>>, vector<1x32xf32>
      %30 = vector.broadcast %29 : vector<1x32xf32> to vector<4x32xf32>
      %31 = arith.addf %28, %30 : vector<4x32xf32>
      %32 = vector.extract_strided_slice %31 {offsets = [0, 0], sizes = [2, 32], strides = [1, 1]} : vector<4x32xf32> to vector<2x32xf32>
      %33 = vector.extract_strided_slice %31 {offsets = [2, 0], sizes = [2, 32], strides = [1, 1]} : vector<4x32xf32> to vector<2x32xf32>
      %34 = arith.addf %32, %33 : vector<2x32xf32>
      %35 = arith.negf %34 : vector<2x32xf32>
      %36 = math.exp %35 : vector<2x32xf32>
      %cst_30 = arith.constant 1.000000e+00 : f32
      %37 = vector.broadcast %cst_30 : f32 to vector<2x32xf32>
      %38 = arith.addf %37, %36 : vector<2x32xf32>
      %39 = arith.divf %37, %38 : vector<2x32xf32>
      %c0_31 = arith.constant 0 : index
      %c0_32 = arith.constant 0 : index
      %40 = vector.load %arg7[%c0_31, %c0_32] : memref<2x32xf32, #tpu.memory_space<vmem>>, vector<2x32xf32>
      tpu.vector_store %arg7[%c0_31, %c0_32], %39 {strides = array<i32>} : memref<2x32xf32, #tpu.memory_space<vmem>>, vector<2x32xf32>,
    } else {
    }
    return
  }
  func.func @transform_0(%arg0: i32, %arg1: i32) -> (i32, i32, i32) {
    %c0_i32 = arith.constant 0 : i32
    %c0_i32_0 = arith.constant 0 : i32
    return %arg0, %arg1, %c0_i32 : i32, i32, i32
  }
  func.func @transform_1(%arg0: i32, %arg1: i32) -> (i32, i32) {
    %c0_i32 = arith.constant 0 : i32
    %c0_i32_0 = arith.constant 0 : i32
    %c0_i32_1 = arith.constant 0 : i32
    return %c0_i32, %c0_i32_0 : i32, i32
  }
  func.func @transform_2(%arg0: i32, %arg1: i32) -> (i32, i32) {
    %c0_i32 = arith.constant 0 : i32
    %c0_i32_0 = arith.constant 0 : i32
    %c0_i32_1 = arith.constant 0 : i32
    return %c0_i32, %c0_i32_0 : i32, i32
  }
  func.func @transform_3(%arg0: i32, %arg1: i32) -> (i32, i32) {
    %c0_i32 = arith.constant 0 : i32
    %c0_i32_0 = arith.constant 0 : i32
    %c0_i32_1 = arith.constant 0 : i32
    return %c0_i32, %c0_i32_0 : i32, i32
  }
  func.func @transform_4(%arg0: i32, %arg1: i32) -> (i32, i32) {
    %c0_i32 = arith.constant 0 : i32
    %c0_i32_0 = arith.constant 0 : i32
    %c0_i32_1 = arith.constant 0 : i32
    return %c0_i32, %c0_i32_0 : i32, i32
  }
  func.func @transform_5(%arg0: i32, %arg1: i32) -> (i32, i32) {
    %c0_i32 = arith.constant 0 : i32
    %c0_i32_0 = arith.constant 0 : i32
    return %arg0, %c0_i32 : i32, i32
  }
}

</mosaic_0001>

<llo_original>
// kernel: tpu_custom_call.1
$region0: #{tpu_custom_call.1}
  #allocation0 [shape = 'u32[]', space=smem, size = 0x4, offset = 0x4, fixed_abs, tag = 'smem constant byte address 0x4 - core index']
  #allocation1 [shape = 'u32[144,128]{1,0:T(1,128)}', space=vmem, size = 0x12000, scoped, tag = 'internal scratch']
  #allocation2 [shape = 'f32[2,32]{1,0:T(2,128)}', space=vmem, size = 0x400, scoped, tag = 'scratch operand']
  #allocation3 [shape = 'f32[2,32]{1,0:T(2,128)}', space=vmem, size = 0x400, scoped, tag = 'scratch operand']
  %s0 = inlined_call_operand.vmem [shape: f32[2,8,32], index: 0, kind: input, shape index: {}]
  %s1 = inlined_call_operand.vmem [shape: f32[32,8], index: 1, kind: input, shape index: {}]
  %s2 = inlined_call_operand.vmem [shape: f32[1,8], index: 2, kind: input, shape index: {}]
  %s3 = inlined_call_operand.vmem [shape: f32[8,32], index: 3, kind: input, shape index: {}]
  %s4 = inlined_call_operand.vmem [shape: f32[1,32], index: 4, kind: input, shape index: {}]
  %s5 = inlined_call_operand.hbm [shape: f32[2,32], index: 5, kind: output, shape index: {}]
  %s6 = sld [smem:[#allocation0]]
  $region38: #{tpu_custom_call.1} parent=0
    _
  %s8 = ssub.s32 1, %s6
  %s9 = scalar_select 0, %s8, %s6
  $region1: #{tpu_custom_call.1} parent=0
    #allocation4 [shape = 'u8[1024]{0}', space=vmem, size = 0x400, scoped, tag = 'output window, operand 0, single buffered']
    #allocation5 [shape = 's32[1]{0}', space=sflag, size = 0x4, scoped, tag = 'scoped memory for tpu_custom_call.1']
    %10 = vsyncpa [#allocation5], 0
    // Predicated region
    $region2: #{tpu_custom_call.1} parent=1 // pred_check
      _
    $region3: #{tpu_custom_call.1} parent=1 // pred_check_branch
      %12 = sbr.rel (0) target = $region5
    $region4: #{tpu_custom_call.1} parent=1 // pred_region
      _
    $region5: #{tpu_custom_call.1} parent=1 // pred_fallthru
      _
    // Predicated region
    $region6: #{tpu_custom_call.1} parent=1 // pred_check
      _
    $region7: #{tpu_custom_call.1} parent=1 // pred_check_branch
      %14 = sbr.rel (0) target = $region9
    $region8: #{tpu_custom_call.1} parent=1 // pred_region
      _
    $region9: #{tpu_custom_call.1} parent=1 // pred_fallthru
      _
    // Predicated region
    $region10: #{tpu_custom_call.1} parent=1 // pred_check
      _
    $region11: #{tpu_custom_call.1} parent=1 // pred_check_branch
      %16 = sbr.rel (0) target = $region13
    $region12: #{tpu_custom_call.1} parent=1 // pred_region
      _
    $region13: #{tpu_custom_call.1} parent=1 // pred_fallthru
      _
    // Predicated region
    $region14: #{tpu_custom_call.1} parent=1 // pred_check
      _
    $region15: #{tpu_custom_call.1} parent=1 // pred_check_branch
      %18 = sbr.rel (0) target = $region17
    $region16: #{tpu_custom_call.1} parent=1 // pred_region
      _
    $region17: #{tpu_custom_call.1} parent=1 // pred_fallthru
      _
    // Predicated region
    $region18: #{tpu_custom_call.1} parent=1 // pred_check
      _
    $region19: #{tpu_custom_call.1} parent=1 // pred_check_branch
      %20 = sbr.rel (0) target = $region21
    $region20: #{tpu_custom_call.1} parent=1 // pred_region
      _
    $region21: #{tpu_custom_call.1} parent=1 // pred_fallthru
      _
    %p21 = scmp.eq.s32.totalorder 0, 0
    // Predicated region
    $region22: #{tpu_custom_call.1} parent=1 // pred_check
      %p22 = pneg %p21
    $region23: #{tpu_custom_call.1} parent=1 // pred_check_branch
      %24 = sbr.rel (%p22) target = $region25
    $region24: #{tpu_custom_call.1} parent=1 // pred_region
      %vm25 = vcmask 254976
      %26 = vst.msk [vmem:[#allocation2] sm:$0x3] %vm25, -inf
      %27 = vst.msk [vmem:[#allocation3] sm:$0x3] %vm25, 0.0
    $region25: #{tpu_custom_call.1} parent=1 // pred_fallthru
      _
    %v28 = vld [vmem:[%s0] sm:$0xff]
    %v29 = vld [vmem:[%s0 + $0x8] sm:$0xff]
    %v30 = vld [vmem:[#allocation2] sm:$0x3]
    %vm31 = vcmask 261120
    %v32 = vsel %vm31, %v28, -inf
    %v33 = vrot.slane %v32, 4
    %v34 = vmax.f32 %v32, %v33
    %v35 = vrot.slane %v34, 2
    %v36 = vmax.f32 %v34, %v35
    %v37 = vrot.slane %v36, 1
    %v38 = vmax.f32 %v36, %v37
    %v39 = vsel %vm31, %v29, -inf
    %v40 = vrot.slane %v39, 4
    %v41 = vmax.f32 %v39, %v40
    %v42 = vrot.slane %v41, 2
    %v43 = vmax.f32 %v41, %v42
    %v44 = vrot.slane %v43, 1
    %v45 = vmax.f32 %v43, %v44
    %vm48 = vcmask 1041409
    %v49 = vsel %vm48, %v45, %v38
    %v51 = vmax.f32 %v30, %v49
    %vm52 = vcmask 254976
    %53 = vst.msk [vmem:[#allocation2] sm:$0x3] %vm52, %v51
    %v54 = vld [vmem:[#allocation3] sm:$0x3]
    %v55 = vsel %vm31, %v28, 0.0
    %v56 = vrot.slane %v55, 4
    %v57 = vadd.f32 %v55, %v56
    %v58 = vrot.slane %v57, 2
    %v59 = vadd.f32 %v57, %v58
    %v60 = vrot.slane %v59, 1
    %v61 = vadd.f32 %v59, %v60
    %v62 = vsel %vm31, %v29, 0.0
    %v63 = vrot.slane %v62, 4
    %v64 = vadd.f32 %v62, %v63
    %v65 = vrot.slane %v64, 2
    %v66 = vadd.f32 %v64, %v65
    %v67 = vrot.slane %v66, 1
    %v68 = vadd.f32 %v66, %v67
    %v71 = vsel %vm48, %v68, %v61
    %v73 = vadd.f32 %v54, %v71
    %74 = vst.msk [vmem:[#allocation3] sm:$0x3] %vm52, %v73
    // Predicated region
    $region26: #{tpu_custom_call.1} parent=1 // pred_check
      %p75 = pneg %p21
    $region27: #{tpu_custom_call.1} parent=1 // pred_check_branch
      %77 = sbr.rel (%p75) target = $region29
    $region28: #{tpu_custom_call.1} parent=1 // pred_region
      %v78 = vld [vmem:[#allocation2] sm:$0x3]
      %v79 = vld [vmem:[#allocation3] sm:$0x3]
      %v80 = vmul.f32 %v79, 0.125
      %v82 = vrot.slane %v80, 6
      %vm84 = vcmask 1041408
      %v85 = vsel %vm84, %v78, %v82
      %v86 = vld [vmem:[%s1] sm:$0xff]
      %v87 = vld [vmem:[%s1 + $0x8] sm:$0xff]
      %v88 = vld [vmem:[%s1 + $0x10] sm:$0xff]
      %v89 = vld [vmem:[%s1 + $0x18] sm:$0xff]
      %v90 = vld [vmem:[%s2] sm:$0x1]
      %v92 = vlaneseq
      %v93 = vshrl.u32 %v92, 7
      %v94 = vsub.s32 0, %v93
      %v95 = vrot.slane %v90, %v94
      %v98 = vsel %vm31, %v85, 0
      %100 = vmatprep.subr.mxu0 0.0
      %101 = vmatpush1.msra.mxu0 %v86
      %102 = vmatprep.subr.mxu0 0.0
      %103 = vmatpush1.msra.mxu0 %v87
      %104 = vmatprep.subr.mxu0 0.0
      %105 = vmatpush1.msra.mxu0 %v88
      %106 = vmatprep.subr.mxu0 0.0
      %107 = vmatpush1.msra.mxu0 %v89
      %108 = vmatprep.subr.mxu0 0.0
      %109 = vmatpush1.msra.mxu0 0.0
      %110 = vmatprep.subr.mxu0 0.0
      %111 = vmatpush1.msra.mxu0 0.0
      %112 = vmatprep.subr.mxu0 0.0
      %113 = vmatpush1.msra.mxu0 0.0
      %114 = vmatprep.subr.mxu0 0.0
      %115 = vmatpush1.msra.mxu0 0.0
      %116 = vmatprep.subr.mxu0 0.0
      %117 = vmatpush1.msra.mxu0 0.0
      %118 = vmatprep.subr.mxu0 0.0
      %119 = vmatpush1.msra.mxu0 0.0
      %120 = vmatprep.subr.mxu0 0.0
      %121 = vmatpush1.msra.mxu0 0.0
      %122 = vmatprep.subr.mxu0 0.0
      %123 = vmatpush1.msra.mxu0 0.0
      %124 = vmatprep.subr.mxu0 0.0
      %125 = vmatpush1.msra.mxu0 0.0
      %126 = vmatprep.subr.mxu0 0.0
      %127 = vmatpush1.msra.mxu0 0.0
      %128 = vmatprep.subr.mxu0 0.0
      %129 = vmatpush1.msra.mxu0 0.0
      %130 = vmatprep.subr.mxu0 0.0
      %131 = vmatpush1.msra.mxu0 0.0
      %132 = vmatprep.subr.mxu0 0.0
      %133 = vmatpush1.msra.mxu0 0.0
      %134 = vmatprep.subr.mxu0 0.0
      %135 = vmatpush1.msra.mxu0 0.0
      %136 = vmatprep.subr.mxu0 0.0
      %137 = vmatpush1.msra.mxu0 0.0
      %138 = vmatprep.subr.mxu0 0.0
      %139 = vmatpush1.msra.mxu0 0.0
      %140 = vmatprep.subr.mxu0 0.0
      %141 = vmatpush1.msra.mxu0 0.0
      %142 = vmatprep.subr.mxu0 0.0
      %143 = vmatpush1.msra.mxu0 0.0
      %144 = vmatprep.subr.mxu0 0.0
      %145 = vmatpush1.msra.mxu0 0.0
      %146 = vmatprep.subr.mxu0 0.0
      %147 = vmatpush1.msra.mxu0 0.0
      %148 = vmatprep.subr.mxu0 0.0
      %149 = vmatpush1.msra.mxu0 0.0
      %150 = vmatprep.subr.mxu0 0.0
      %151 = vmatpush1.msra.mxu0 0.0
      %152 = vmatprep.subr.mxu0 0.0
      %153 = vmatpush1.msra.mxu0 0.0
      %154 = vmatprep.subr.mxu0 0.0
      %155 = vmatpush1.msra.mxu0 0.0
      %156 = vmatprep.subr.mxu0 0.0
      %157 = vmatpush1.msra.mxu0 0.0
      %158 = vmatprep.subr.mxu0 0.0
      %159 = vmatpush1.msra.mxu0 0.0
      %160 = vmatprep.subr.mxu0 0.0
      %161 = vmatpush1.msra.mxu0 0.0
      %162 = vmatprep.subr.mxu0 0.0
      %163 = vmatpush1.msra.mxu0 0.0
      %164 = vmatprep.mubr.f32.mxu0 0.0
      %165 = vmatmul.mubr.f32.gmra.mrb[0].mxu0 %v98
      %v166 = vpop.f32.mrb[0].mxu0
      %v167 = vadd.f32 %v95, %v166
      %v168 = vpop.f32.mrb[0].mxu0
      %169 = vdwg.mxu0
      %v170 = vmax.f32 %v167, 0.0
      %v171 = vld [vmem:[%s3] sm:$0xff]
      %v172 = vld [vmem:[%s4] sm:$0x1]
      %v174 = vlaneseq
      %v175 = vshrl.u32 %v174, 7
      %v176 = vsub.s32 0, %v175
      %v177 = vrot.slane %v172, %v176
      %vm179 = vcmask 64512
      %v181 = vsel %vm179, %v170, 0
      %183 = vmatprep.subr.mxu0 0.0
      %184 = vmatpush1.msra.mxu0 %v171
      %185 = vmatprep.subr.mxu0 0.0
      %186 = vmatpush1.msra.mxu0 0.0
      %187 = vmatprep.subr.mxu0 0.0
      %188 = vmatpush1.msra.mxu0 0.0
      %189 = vmatprep.subr.mxu0 0.0
      %190 = vmatpush1.msra.mxu0 0.0
      %191 = vmatprep.subr.mxu0 0.0
      %192 = vmatpush1.msra.mxu0 0.0
      %193 = vmatprep.subr.mxu0 0.0
      %194 = vmatpush1.msra.mxu0 0.0
      %195 = vmatprep.subr.mxu0 0.0
      %196 = vmatpush1.msra.mxu0 0.0
      %197 = vmatprep.subr.mxu0 0.0
      %198 = vmatpush1.msra.mxu0 0.0
      %199 = vmatprep.subr.mxu0 0.0
      %200 = vmatpush1.msra.mxu0 0.0
      %201 = vmatprep.subr.mxu0 0.0
      %202 = vmatpush1.msra.mxu0 0.0
      %203 = vmatprep.subr.mxu0 0.0
      %204 = vmatpush1.msra.mxu0 0.0
      %205 = vmatprep.subr.mxu0 0.0
      %206 = vmatpush1.msra.mxu0 0.0
      %207 = vmatprep.subr.mxu0 0.0
      %208 = vmatpush1.msra.mxu0 0.0
      %209 = vmatprep.subr.mxu0 0.0
      %210 = vmatpush1.msra.mxu0 0.0
      %211 = vmatprep.subr.mxu0 0.0
      %212 = vmatpush1.msra.mxu0 0.0
      %213 = vmatprep.subr.mxu0 0.0
      %214 = vmatpush1.msra.mxu0 0.0
      %215 = vmatprep.subr.mxu0 0.0
      %216 = vmatpush1.msra.mxu0 0.0
      %217 = vmatprep.subr.mxu0 0.0
      %218 = vmatpush1.msra.mxu0 0.0
      %219 = vmatprep.subr.mxu0 0.0
      %220 = vmatpush1.msra.mxu0 0.0
      %221 = vmatprep.subr.mxu0 0.0
      %222 = vmatpush1.msra.mxu0 0.0
      %223 = vmatprep.subr.mxu0 0.0
      %224 = vmatpush1.msra.mxu0 0.0
      %225 = vmatprep.subr.mxu0 0.0
      %226 = vmatpush1.msra.mxu0 0.0
      %227 = vmatprep.subr.mxu0 0.0
      %228 = vmatpush1.msra.mxu0 0.0
      %229 = vmatprep.subr.mxu0 0.0
      %230 = vmatpush1.msra.mxu0 0.0
      %231 = vmatprep.subr.mxu0 0.0
      %232 = vmatpush1.msra.mxu0 0.0
      %233 = vmatprep.subr.mxu0 0.0
      %234 = vmatpush1.msra.mxu0 0.0
      %235 = vmatprep.subr.mxu0 0.0
      %236 = vmatpush1.msra.mxu0 0.0
      %237 = vmatprep.subr.mxu0 0.0
      %238 = vmatpush1.msra.mxu0 0.0
      %239 = vmatprep.subr.mxu0 0.0
      %240 = vmatpush1.msra.mxu0 0.0
      %241 = vmatprep.subr.mxu0 0.0
      %242 = vmatpush1.msra.mxu0 0.0
      %243 = vmatprep.subr.mxu0 0.0
      %244 = vmatpush1.msra.mxu0 0.0
      %245 = vmatprep.subr.mxu0 0.0
      %246 = vmatpush1.msra.mxu0 0.0
      %247 = vmatprep.mubr.f32.mxu0 0.0
      %248 = vmatmul.mubr.f32.gmra.mrb[0].mxu0 %v181
      %v249 = vpop.f32.mrb[0].mxu0
      %v250 = vadd.f32 %v177, %v249
      %v251 = vpop.f32.mrb[0].mxu0
      %252 = vdwg.mxu0
      %v254 = vrot.slane %v250, 2
      %v256 = vadd.f32 %v250, %v254
      %v257 = vxor.u32 %v256, 2147483648
      %v258 = vmul.f32 %v257, 1.442695
      %v259 = vpow.pop %v258
      %v260 = vadd.f32 %v259, 1.0
      %v261 = vrcp.pop %v260
      %v262 = vmul.f32 1.0, %v261
      %263 = vst.msk [vmem:[#allocation4] sm:$0x3] %vm52, %v262
    $region29: #{tpu_custom_call.1} parent=1 // pred_fallthru
      _
    // Predicated region
    $region30: #{tpu_custom_call.1} parent=1 // pred_check
      _
    $region31: #{tpu_custom_call.1} parent=1 // pred_check_branch
      %265 = sbr.rel (0) target = $region33
    $region32: #{tpu_custom_call.1} parent=1 // pred_region
      %s267 = ssub.s32 32, 32
      %268 = vsyncadd [#allocation5], %s267
      %s270 = sshll.u32 [#allocation4], 4
      %s271 = int_to_ptr.vmem [resolvable:$true] %s270
      %273 = dma.vmem_to_hbm [thread:$0]  %s271, 32, %s5, [#allocation5]
    $region33: #{tpu_custom_call.1} parent=1 // pred_fallthru
      _
    // Predicated region
    $region34: #{tpu_custom_call.1} parent=1 // pred_check
      _
    $region35: #{tpu_custom_call.1} parent=1 // pred_check_branch
      %275 = sbr.rel (0) target = $region37
    $region36: #{tpu_custom_call.1} parent=1 // pred_region
      %276 = dma.done [#allocation5], 32
    $region37: #{tpu_custom_call.1} parent=1 // pred_fallthru
      _
    %277 = vsyncpa [#allocation5], 1

</llo_original>
